<compile_context>
chip_gen: v7x
topology: tpu7x:2x2x1
jax: 0.10.0
libtpu: 0.0.40
codegen_flags: <defaults>
</compile_context>

<pallas_src>
import jax
import jax.numpy as jnp
from jax.experimental import pallas as pl
from jax.experimental.pallas import tpu as pltpu

_EPS = 1e-3      # standard ACT halting threshold slack
_LANE = 128
_SUBLANE = 8


def _round_up(x, m):
    return ((x + m - 1) // m) * m


def _act_controller_kernel(x_ref, w_ref, b_ref, cum_ref, acc_ref,
                           p_ref, cum_out_ref, acc_out_ref):
    """Fused: linear(d_model->1) + sigmoid + ACT accumulation step (one batch tile).

    x_ref:   (TB, D)  control embedding tile (VMEM)
    w_ref:   (1,  D)  probability_projector weight, lane-dense f32 row (VMEM)
    b_ref:   (1,)     probability_projector bias (SMEM scalar)
    cum_ref: (TB, 1)  cumulative halting probability so far (VMEM, f32)
    acc_ref: (TB, D)  accumulated "output" (output=embedding per the docstring example)
    """
    w = w_ref[...].astype(jnp.float32)                 # (1, D), broadcast over rows
    b = b_ref[0]                                       # scalar from SMEM

    # Halting probability: sigmoid(<x, w> + b), kept as a (TB, 1) column.
    # VPU multiply + XLU lane-reduce instead of a 1-output-column MXU matmul.
    logits = jnp.sum(x_ref[...].astype(jnp.float32) * w, axis=-1, keepdims=True) + b
    p = jax.nn.sigmoid(logits)                         # (TB, 1) f32

    # ACT step: only still-running samples accumulate probability mass.
    cum = cum_ref[...]                                 # (TB, 1) f32
    running = (cum < (1.0 - _EPS)).astype(jnp.float32)
    p_eff = p * running

    p_ref[...] = p
    cum_out_ref[...] = cum + p_eff
    # Re-read/cast x here instead of holding a bound f32 copy live across both
    # uses (keeps vreg/VMEM pressure down at large tiles).
    acc_out_ref[...] = (acc_ref[...].astype(jnp.float32)
                        + p_eff * x_ref[...].astype(jnp.float32)
                        ).astype(acc_out_ref.dtype)


def act_controller_forward(control_embedding, weight, bias, cum_prob, accum,
                           *, block_b=None):
    """Run one ACTController.forward step.

    control_embedding: (..., d_model)
    weight:            (1, d_model)  -- torch nn.Linear(d_model, 1).weight
    bias:              (1,)          -- torch nn.Linear(d_model, 1).bias
    cum_prob:          (...,)        cumulative halting probability (ACT state)
    accum:             (..., d_model) accumulated "output" (ACT state)

    Returns (halting_prob (...,), new_cum_prob (...,), new_accum (..., d_model),
             halted_mask (...,) float32 {0,1}).

    The (cum_prob, accum) inputs are aliased to the (new_cum, new_accum)
    outputs; donate them under jit for a true in-place state update.
    """
    batch_shape = control_embedding.shape[:-1]
    d_model = control_embedding.shape[-1]
    B = 1
    for s in batch_shape:
        B *= s

    # Flatten batch dims only -- no padding, no trailing slices.
    x2 = control_embedding.reshape(B, d_model)
    acc2 = accum.reshape(B, d_model)
    cum2 = cum_prob.reshape(B, 1).astype(jnp.float32)
    w2 = weight.reshape(1, d_model).astype(jnp.float32)   # keep f32 (tiny row)
    b2 = bias.reshape(1).astype(jnp.float32)

    # ---- tile sizing (bytes-based, dtype-aware, generation-aware) ----
    d_pad = _round_up(max(d_model, 1), _LANE)              # VMEM lane footprint
    x_sz = jnp.dtype(x2.dtype).itemsize
    a_sz = jnp.dtype(acc2.dtype).itemsize
    try:
        vmem_cap = pltpu.get_tpu_info().vmem_capacity_bytes
    except Exception:
        vmem_cap = 64 * 1024 * 1024                         # v7x per-TC physical (safe floor)
    vmem_budget = int(min(vmem_cap // 2, 48 * 1024 * 1024)) # 48 MiB v5e/v6e, 32 MiB v7x

    # VMEM bytes per batch row, double-buffered:
    #   wide streams: x(in), acc(in), acc(out); narrow lane-padded columns:
    #   cum(in), p(out), new_cum(out).
    per_row = 2 * (d_pad * (x_sz + 2 * a_sz) + 3 * _LANE * 4)
    if block_b is None:
        # ~half the budget for the pipelined buffers, rest is headroom for
        # in-kernel f32 intermediates + Mosaic internal scratch.
        block_b = max(_SUBLANE, (vmem_budget // 2) // per_row)
    if block_b >= B:
        block_b = B                 # single block == full dim (no (8) constraint)
    else:
        block_b = max(_SUBLANE, (block_b // _SUBLANE) * _SUBLANE)
    grid_b = pl.cdiv(B, block_b)    # ragged last tile handled by Pallas masking

    out_shapes = (
        jax.ShapeDtypeStruct((B, 1), jnp.float32),            # halting prob
        jax.ShapeDtypeStruct((B, 1), jnp.float32),            # new cumulative prob
        jax.ShapeDtypeStruct((B, d_model), accum.dtype),       # new accumulator
    )

    row_spec = pl.BlockSpec((block_b, d_model), lambda i: (i, 0))
    # TODO(synk): for tiny d_model these lane-width-1 streams could be made
    #             lane-dense; the wide acc stream dominates so it is skipped.
    col_spec = pl.BlockSpec((block_b, 1), lambda i: (i, 0))

    p, new_cum, new_acc = pl.pallas_call(
        _act_controller_kernel,
        out_shape=out_shapes,
        grid=(grid_b,),
        in_specs=[
            row_spec,                                            # x
            pl.BlockSpec((1, d_model), lambda i: (0, 0)),        # weight row (f32)
            pl.BlockSpec(memory_space=pltpu.MemorySpace.SMEM),   # bias scalar
            col_spec,                                            # cumulative prob (state)
            row_spec,                                            # accumulator (state)
        ],
        out_specs=[col_spec, col_spec, row_spec],
        # In-place update of the real ACT state streams (donate them in the caller).
        input_output_aliases={3: 1, 4: 2},
        compiler_params=pltpu.CompilerParams(
            dimension_semantics=("parallel",),
            vmem_limit_bytes=vmem_budget),
    )(x2, w2, b2, cum2, acc2)

    p = p.reshape(batch_shape)
    new_cum = new_cum.reshape(batch_shape)
    new_acc = new_acc.reshape(batch_shape + (d_model,))
    # Halted mask derived in the wrapper (one jnp op) instead of a 4th
    # lane-width-1 kernel output stream.
    halted = (new_cum >= (1.0 - _EPS)).astype(jnp.float32)
    return p, new_cum, new_acc, halted


def _reference(control_embedding, weight, bias, cum_prob, accum):
    """Pure-JAX reference for validation."""
    xf = control_embedding.astype(jnp.float32)
    logits = jnp.einsum('...d,d->...', xf,
                        weight.reshape(-1).astype(jnp.float32)) + bias[0]
    p = jax.nn.sigmoid(logits)
    running = (cum_prob.astype(jnp.float32) < (1.0 - _EPS)).astype(jnp.float32)
    p_eff = p * running
    new_cum = cum_prob.astype(jnp.float32) + p_eff
    new_acc = accum.astype(jnp.float32) + p_eff[..., None] * xf
    halted = (new_cum >= (1.0 - _EPS)).astype(jnp.float32)
    return p, new_cum, new_acc.astype(accum.dtype), halted


if __name__ == "__main__":
    key = jax.random.PRNGKey(0)
    k_x, k_w, k_b, k_x2, k_a2 = jax.random.split(key, 5)

    fwd = jax.jit(act_controller_forward, static_argnames=("block_b",))

    # --- Test 1: fresh ACT state, d_model not a multiple of 128 ---
    batch_shape = (2, 4)
    d_model = 32
    x = jax.random.normal(k_x, batch_shape + (d_model,), dtype=jnp.float32)
    bound = 1.0 / (d_model ** 0.5)
    weight = jax.random.uniform(k_w, (1, d_model), minval=-bound, maxval=bound,
                                dtype=jnp.float32)
    bias = jax.random.uniform(k_b, (1,), minval=-bound, maxval=bound, dtype=jnp.float32)
    cum_prob = jnp.zeros(batch_shape, dtype=jnp.float32)
    accum = jnp.zeros(batch_shape + (d_model,), dtype=jnp.float32)

    p, new_cum, new_acc, halted = fwd(x, weight, bias, cum_prob, accum)
    jax.block_until_ready((p, new_cum, new_acc, halted))

    rp, rc, ra, rh = _reference(x, weight, bias, cum_prob, accum)
    assert jnp.allclose(p, rp, atol=1e-5), "halting prob mismatch (test 1)"
    assert jnp.allclose(new_cum, rc, atol=1e-5), "cumulative prob mismatch (test 1)"
    assert jnp.allclose(new_acc, ra, atol=1e-5), "accumulator mismatch (test 1)"
    assert jnp.allclose(halted, rh), "halted mask mismatch (test 1)"

    # --- Test 2: ragged batch tile (B=15, block_b=8 -> masked last tile),
    #             nonzero accumulator state, one already-halted sample ---
    batch_shape2 = (15,)
    d2 = 48
    x2 = jax.random.normal(k_x2, batch_shape2 + (d2,), dtype=jnp.float32)
    bound2 = 1.0 / (d2 ** 0.5)
    w2 = jax.random.uniform(k_w, (1, d2), minval=-bound2, maxval=bound2,
                            dtype=jnp.float32)
    cum2 = jnp.zeros(batch_shape2, dtype=jnp.float32).at[3].set(0.9995)  # halted sample
    acc2 = 0.1 * jax.random.normal(k_a2, batch_shape2 + (d2,), dtype=jnp.float32)

    p2, nc2, na2, h2 = fwd(x2, w2, bias, cum2, acc2, block_b=8)
    jax.block_until_ready((p2, nc2, na2, h2))

    rp2, rc2, ra2, rh2 = _reference(x2, w2, bias, cum2, acc2)
    assert jnp.allclose(p2, rp2, atol=1e-5), "halting prob mismatch (test 2)"
    assert jnp.allclose(nc2, rc2, atol=1e-5), "cumulative prob mismatch (test 2)"
    assert jnp.allclose(na2, ra2, atol=1e-5), "accumulator mismatch (test 2)"
    assert jnp.allclose(h2, rh2), "halted mask mismatch (test 2)"

    print("KERNEL_OK")
</pallas_src>

<mosaic_0001>
module attributes {stable_mosaic.version = 11 : i64} {
  func.func @_act_controller_kernel(%arg0: i32, %arg1: memref<8x32xf32, #tpu.memory_space<vmem>>, %arg2: memref<1x32xf32, #tpu.memory_space<vmem>>, %arg3: memref<1xf32, #tpu.memory_space<smem>>, %arg4: memref<8x1xf32, #tpu.memory_space<vmem>>, %arg5: memref<8x32xf32, #tpu.memory_space<vmem>>, %arg6: memref<8x1xf32, #tpu.memory_space<vmem>>, %arg7: memref<8x1xf32, #tpu.memory_space<vmem>>, %arg8: memref<8x32xf32, #tpu.memory_space<vmem>>) attributes {dimension_semantics = [#tpu.dimension_semantics<parallel>], iteration_bounds = array<i64: 1>, scalar_prefetch = 0 : i64, scratch_operands = 0 : i64, tpu.core_type = #tpu.core_type<tc>, window_params = [{transform_indices = @transform_0, window_bounds = array<i64: 8, 32>}, {pipeline_mode = #tpu.pipeline_mode<synchronous>, transform_indices = @transform_1, window_bounds = array<i64: 1, 32>}, {transform_indices = @transform_2, window_bounds = array<i64: 1>}, {transform_indices = @transform_3, window_bounds = array<i64: 8, 1>}, {transform_indices = @transform_4, window_bounds = array<i64: 8, 32>}, {transform_indices = @transform_5, window_bounds = array<i64: 8, 1>}, {transform_indices = @transform_6, window_bounds = array<i64: 8, 1>}, {transform_indices = @transform_7, window_bounds = array<i64: 8, 32>}]} {
    %c0 = arith.constant 0 : index
    %c0_0 = arith.constant 0 : index
    %0 = vector.load %arg2[%c0, %c0_0] : memref<1x32xf32, #tpu.memory_space<vmem>>, vector<1x32xf32>
    %c0_1 = arith.constant 0 : index
    %1 = memref.load %arg3[%c0_1] : memref<1xf32, #tpu.memory_space<smem>>
    %c0_2 = arith.constant 0 : index
    %c0_3 = arith.constant 0 : index
    %2 = vector.load %arg1[%c0_2, %c0_3] : memref<8x32xf32, #tpu.memory_space<vmem>>, vector<8x32xf32>
    %3 = vector.broadcast %0 : vector<1x32xf32> to vector<8x32xf32>
    %4 = arith.mulf %2, %3 : vector<8x32xf32>
    %cst = arith.constant dense<0.000000e+00> : vector<8xf32>
    %5 = vector.multi_reduction <add>, %4, %cst [1] : vector<8x32xf32> to vector<8xf32>
    %6 = vector.shape_cast %5 : vector<8xf32> to vector<8x1xf32>
    %7 = vector.broadcast %1 : f32 to vector<8x1xf32>
    %8 = arith.addf %6, %7 : vector<8x1xf32>
    %9 = arith.negf %8 : vector<8x1xf32>
    %10 = math.exp %9 : vector<8x1xf32>
    %cst_4 = arith.constant 1.000000e+00 : f32
    %11 = vector.broadcast %cst_4 : f32 to vector<8x1xf32>
    %12 = arith.addf %11, %10 : vector<8x1xf32>
    %13 = arith.divf %11, %12 : vector<8x1xf32>
    %c0_5 = arith.constant 0 : index
    %c0_6 = arith.constant 0 : index
    %14 = vector.load %arg4[%c0_5, %c0_6] : memref<8x1xf32, #tpu.memory_space<vmem>>, vector<8x1xf32>
    %cst_7 = arith.constant 9.990000e-01 : f32
    %15 = vector.broadcast %cst_7 : f32 to vector<8x1xf32>
    %16 = arith.cmpf olt, %14, %15 : vector<8x1xf32>
    %17 = arith.extui %16 : vector<8x1xi1> to vector<8x1xi32>
    %18 = arith.sitofp %17 : vector<8x1xi32> to vector<8x1xf32>
    %19 = arith.mulf %13, %18 : vector<8x1xf32>
    %c0_8 = arith.constant 0 : index
    %c0_9 = arith.constant 0 : index
    %20 = vector.load %arg6[%c0_8, %c0_9] : memref<8x1xf32, #tpu.memory_space<vmem>>, vector<8x1xf32>
    tpu.vector_store %arg6[%c0_8, %c0_9], %13 {strides = array<i32>} : memref<8x1xf32, #tpu.memory_space<vmem>>, vector<8x1xf32>,
    %21 = arith.addf %14, %19 : vector<8x1xf32>
    %c0_10 = arith.constant 0 : index
    %c0_11 = arith.constant 0 : index
    %22 = vector.load %arg7[%c0_10, %c0_11] : memref<8x1xf32, #tpu.memory_space<vmem>>, vector<8x1xf32>
    tpu.vector_store %arg7[%c0_10, %c0_11], %21 {strides = array<i32>} : memref<8x1xf32, #tpu.memory_space<vmem>>, vector<8x1xf32>,
    %c0_12 = arith.constant 0 : index
    %c0_13 = arith.constant 0 : index
    %23 = vector.load %arg5[%c0_12, %c0_13] : memref<8x32xf32, #tpu.memory_space<vmem>>, vector<8x32xf32>
    %c0_14 = arith.constant 0 : index
    %c0_15 = arith.constant 0 : index
    %24 = vector.load %arg1[%c0_14, %c0_15] : memref<8x32xf32, #tpu.memory_space<vmem>>, vector<8x32xf32>
    %25 = vector.broadcast %19 : vector<8x1xf32> to vector<8x32xf32>
    %26 = arith.mulf %25, %24 : vector<8x32xf32>
    %27 = arith.addf %23, %26 : vector<8x32xf32>
    %c0_16 = arith.constant 0 : index
    %c0_17 = arith.constant 0 : index
    %28 = vector.load %arg8[%c0_16, %c0_17] : memref<8x32xf32, #tpu.memory_space<vmem>>, vector<8x32xf32>
    tpu.vector_store %arg8[%c0_16, %c0_17], %27 {strides = array<i32>} : memref<8x32xf32, #tpu.memory_space<vmem>>, vector<8x32xf32>,
    return
  }
  func.func @transform_0(%arg0: i32) -> (i32, i32) {
    %c0_i32 = arith.constant 0 : i32
    %c0_i32_0 = arith.constant 0 : i32
    return %arg0, %c0_i32 : i32, i32
  }
  func.func @transform_1(%arg0: i32) -> (i32, i32) {
    %c0_i32 = arith.constant 0 : i32
    %c0_i32_0 = arith.constant 0 : i32
    %c0_i32_1 = arith.constant 0 : i32
    return %c0_i32, %c0_i32_0 : i32, i32
  }
  func.func @transform_2(%arg0: i32) -> i32 {
    %c0_i32 = arith.constant 0 : i32
    %c0_i32_0 = arith.constant 0 : i32
    return %c0_i32 : i32
  }
  func.func @transform_3(%arg0: i32) -> (i32, i32) {
    %c0_i32 = arith.constant 0 : i32
    %c0_i32_0 = arith.constant 0 : i32
    return %arg0, %c0_i32 : i32, i32
  }
  func.func @transform_4(%arg0: i32) -> (i32, i32) {
    %c0_i32 = arith.constant 0 : i32
    %c0_i32_0 = arith.constant 0 : i32
    return %arg0, %c0_i32 : i32, i32
  }
  func.func @transform_5(%arg0: i32) -> (i32, i32) {
    %c0_i32 = arith.constant 0 : i32
    %c0_i32_0 = arith.constant 0 : i32
    return %arg0, %c0_i32 : i32, i32
  }
  func.func @transform_6(%arg0: i32) -> (i32, i32) {
    %c0_i32 = arith.constant 0 : i32
    %c0_i32_0 = arith.constant 0 : i32
    return %arg0, %c0_i32 : i32, i32
  }
  func.func @transform_7(%arg0: i32) -> (i32, i32) {
    %c0_i32 = arith.constant 0 : i32
    %c0_i32_0 = arith.constant 0 : i32
    return %arg0, %c0_i32 : i32, i32
  }
}

</mosaic_0001>

<llo_original>
// kernel: act_controller_forward.1
$region0: #{act_controller_forward.1}
  #allocation0 [shape = 'u32[]', space=smem, size = 0x4, offset = 0x4, fixed_abs, tag = 'smem constant byte address 0x4 - core index']
  #allocation1 [shape = 'u32[144,128]{1,0:T(1,128)}', space=vmem, size = 0x12000, scoped, tag = 'internal scratch']
  #allocation2 [shape = 'f32[1]{0:T(128)S(6)}', space=smem, size = 0x200, scoped, tag = 'scoped memory for act_controller_forward.1']
  %s0 = inlined_call_operand.vmem [shape: f32[8,32], index: 0, kind: input, shape index: {}]
  %s1 = inlined_call_operand.vmem [shape: f32[1,32], index: 1, kind: input, shape index: {}]
  %s2 = inlined_call_operand.<no memory space> [shape: f32[1], index: 2, kind: input, shape index: {}]
  %s3 = inlined_call_operand.vmem [shape: f32[8,1], index: 3, kind: input, shape index: {}, may-alias: {3,6}]
  %s4 = inlined_call_operand.vmem [shape: f32[8,32], index: 4, kind: input, shape index: {}, may-alias: {4,7}]
  %s5 = inlined_call_operand.vmem [shape: f32[8,1], index: 5, kind: output, shape index: {0}]
  %s6 = inlined_call_operand.vmem [shape: f32[8,1], index: 6, kind: output, shape index: {1}, may-alias: {3,6}]
  %s7 = inlined_call_operand.vmem [shape: f32[8,32], index: 7, kind: output, shape index: {2}, may-alias: {4,7}]
  %8 = xla_tuple %s5, %s6, %s7
  %s9 = sld [smem:[#allocation0]]
  $region46: #{act_controller_forward.1} parent=0
    _
  %s11 = ssub.s32 1, %s9
  %s12 = scalar_select 0, %s11, %s9
  %13 = sst [smem:[#allocation2]] %s2
  // Predicated region
  $region2: #{act_controller_forward.1} parent=0 // pred_check
    _
  $region3: #{act_controller_forward.1} parent=0 // pred_check_branch
    %15 = sbr.rel (0) target = $region5
  $region4: #{act_controller_forward.1} parent=0 // pred_region
    _
  $region5: #{act_controller_forward.1} parent=0 // pred_fallthru
    _
  // Predicated region
  $region6: #{act_controller_forward.1} parent=0 // pred_check
    _
  $region7: #{act_controller_forward.1} parent=0 // pred_check_branch
    %17 = sbr.rel (0) target = $region9
  $region8: #{act_controller_forward.1} parent=0 // pred_region
    _
  $region9: #{act_controller_forward.1} parent=0 // pred_fallthru
    _
  // Predicated region
  $region10: #{act_controller_forward.1} parent=0 // pred_check
    _
  $region11: #{act_controller_forward.1} parent=0 // pred_check_branch
    %19 = sbr.rel (0) target = $region13
  $region12: #{act_controller_forward.1} parent=0 // pred_region
    _
  $region13: #{act_controller_forward.1} parent=0 // pred_fallthru
    _
  // Predicated region
  $region14: #{act_controller_forward.1} parent=0 // pred_check
    _
  $region15: #{act_controller_forward.1} parent=0 // pred_check_branch
    %21 = sbr.rel (0) target = $region17
  $region16: #{act_controller_forward.1} parent=0 // pred_region
    _
  $region17: #{act_controller_forward.1} parent=0 // pred_fallthru
    _
  // Predicated region
  $region18: #{act_controller_forward.1} parent=0 // pred_check
    _
  $region19: #{act_controller_forward.1} parent=0 // pred_check_branch
    %23 = sbr.rel (0) target = $region21
  $region20: #{act_controller_forward.1} parent=0 // pred_region
    _
  $region21: #{act_controller_forward.1} parent=0 // pred_fallthru
    _
  %v24 = vld [vmem:[%s1] sm:$0x1]
  %s25 = sld [smem:[#allocation2]]
  %v26 = vld [vmem:[%s0] sm:$0xff]
  %v28 = vlaneseq
  %v29 = vshrl.u32 %v28, 7
  %v30 = vsub.s32 0, %v29
  %v31 = vrot.slane %v24, %v30
  %v33 = vmul.f32 %v26, %v31
  %vm34 = vcmask 261120
  %v35 = vsel %vm34, %v33, 0.0
  %36 = vadd.xlane.f32.xlu0 %v35
  %v37 = vpop.xlane.xlu0 %36
  %v38 = vstv %s25
  %v39 = vadd.f32 %v37, %v38
  %v40 = vxor.u32 %v39, 2147483648
  %v41 = vmul.f32 %v40, 1.442695
  %v42 = vpow.pop %v41
  %v43 = vadd.f32 %v42, 1.0
  %v44 = vrcp.pop %v43
  %v45 = vmul.f32 1.0, %v44
  %v46 = vld [vmem:[%s3] sm:$0xff]
  %vm47 = vcmp.lt.f32.partialorder %v46, 0.999
  %v48 = vsel %vm47, 1, 0
  %v49 = vcvt.s32.f32 %v48
  %v50 = vmul.f32 %v45, %v49
  %vm51 = vcmask 7168
  %52 = vst.msk [vmem:[%s5] sm:$0xff] %vm51, %v45
  %v53 = vadd.f32 %v46, %v50
  %54 = vst.msk [vmem:[%s6] sm:$0xff] %vm51, %v53
  %v55 = vld [vmem:[%s4] sm:$0xff]
  %v56 = vld [vmem:[%s0] sm:$0xff]
  %58 = vset.pattern.permute.xlu0 0
  %59 = vperm.xlu0 %58, %v50
  %v60 = vpop.permute.xlu0 %59
  %v62 = vmul.f32 %v60, %v56
  %v63 = vadd.f32 %v55, %v62
  %64 = vst.msk [vmem:[%s7] sm:$0xff] %vm34, %v63
  // Predicated region
  $region22: #{act_controller_forward.1} parent=0 // pred_check
    _
  $region23: #{act_controller_forward.1} parent=0 // pred_check_branch
    %66 = sbr.rel (0) target = $region25
  $region24: #{act_controller_forward.1} parent=0 // pred_region
    _
  $region25: #{act_controller_forward.1} parent=0 // pred_fallthru
    _
  // Predicated region
  $region26: #{act_controller_forward.1} parent=0 // pred_check
    _
  $region27: #{act_controller_forward.1} parent=0 // pred_check_branch
    %68 = sbr.rel (0) target = $region29
  $region28: #{act_controller_forward.1} parent=0 // pred_region
    _
  $region29: #{act_controller_forward.1} parent=0 // pred_fallthru
    _
  // Predicated region
  $region30: #{act_controller_forward.1} parent=0 // pred_check
    _
  $region31: #{act_controller_forward.1} parent=0 // pred_check_branch
    %70 = sbr.rel (0) target = $region33
  $region32: #{act_controller_forward.1} parent=0 // pred_region
    _
  $region33: #{act_controller_forward.1} parent=0 // pred_fallthru
    _
  // Predicated region
  $region34: #{act_controller_forward.1} parent=0 // pred_check
    _
  $region35: #{act_controller_forward.1} parent=0 // pred_check_branch
    %72 = sbr.rel (0) target = $region37
  $region36: #{act_controller_forward.1} parent=0 // pred_region
    _
  $region37: #{act_controller_forward.1} parent=0 // pred_fallthru
    _
  // Predicated region
  $region38: #{act_controller_forward.1} parent=0 // pred_check
    _
  $region39: #{act_controller_forward.1} parent=0 // pred_check_branch
    %74 = sbr.rel (0) target = $region41
  $region40: #{act_controller_forward.1} parent=0 // pred_region
    _
  $region41: #{act_controller_forward.1} parent=0 // pred_fallthru
    _
  // Predicated region
  $region42: #{act_controller_forward.1} parent=0 // pred_check
    _
  $region43: #{act_controller_forward.1} parent=0 // pred_check_branch
    %76 = sbr.rel (0) target = $region45
  $region44: #{act_controller_forward.1} parent=0 // pred_region
    _
  $region45: #{act_controller_forward.1} parent=0 // pred_fallthru
    _

</llo_original>
